<compile_context>
chip_gen: v5e
topology: v5e:2x2
jax: 0.10.0
libtpu: 0.0.40
codegen_flags: <defaults>
</compile_context>

<pallas_src>
import jax
import jax.numpy as jnp
from jax.experimental import pallas as pl
from jax.experimental.pallas import tpu as pltpu


# ----------------------------- small helpers --------------------------------

def _cdiv(a, b):
    return -(-a // b)


def _round_up(a, b):
    return _cdiv(a, b) * b


def _round_down(a, b):
    return (a // b) * b


def _sublane_pack(dtype):
    # Native sublane packing: f32 -> 8, bf16 -> 16, int8/fp8 -> 32.
    return max(8, 32 // jnp.dtype(dtype).itemsize)


# ------------------------------- kernels -------------------------------------

def _add_pe_3d_kernel(x_ref, pe_ref, o_ref):
    # x_ref : (B, TS, D) tile of the input
    # pe_ref: (TS, D) tile of the positional-embedding rows (native dtype)
    # Cast pe in-kernel (VPU slots are idle in this DMA-bound kernel).
    o_ref[...] = x_ref[...] + pe_ref[...].astype(o_ref.dtype)[None]


def _add_pe_2d_kernel(x_ref, pe_ref, o_ref):
    # x_ref : (B, TL) tile of the lane-dense flattened input
    # pe_ref: (1, TL) tile of the flattened pe rows (native dtype)
    o_ref[...] = x_ref[...] + pe_ref[...].astype(o_ref.dtype)


# ----------------------------- wrapper paths ---------------------------------

def _run_3d(x, pe_weight, *, target_x_tile_bytes, vmem_budget_bytes, in_place):
    """D % 128 == 0: keep x 3-D, tile over S with full sublane occupancy."""
    B, S, D = x.shape
    itemsize = jnp.dtype(x.dtype).itemsize
    pe_itemsize = jnp.dtype(pe_weight.dtype).itemsize
    pack = _sublane_pack(x.dtype)

    # VMEM bytes per S row of a block: x + out (B rows each) + 1 pe row.
    # TS is kept a multiple of `pack`, so there is no sublane padding waste.
    bytes_per_row = 2 * B * D * itemsize + D * pe_itemsize
    max_rows_budget = max(1, vmem_budget_bytes // (2 * bytes_per_row))  # 2x double buffer
    target_rows = max(1, target_x_tile_bytes // max(1, B * D * itemsize))

    TS = min(max_rows_budget, target_rows, S)
    TS = max(pack, _round_down(TS, pack))
    if TS >= S:
        TS = S  # single full-S block (block dim == full dim is always legal)
    else:
        n = _cdiv(S, TS)
        if 1 < n < 4:
            # v7x megacore: prefer >=4 parallel steps (>=2 per TensorCore).
            ts4 = _round_up(_cdiv(S, 4), pack)
            if ts4 >= pack and B * ts4 * D * itemsize >= (256 << 10):
                TS = min(TS, ts4)

    grid = (_cdiv(S, TS),)
    cost = pl.CostEstimate(
        flops=B * S * D,
        transcendentals=0,
        bytes_accessed=2 * B * S * D * itemsize + S * D * pe_itemsize,
    )

    return pl.pallas_call(
        _add_pe_3d_kernel,
        out_shape=jax.ShapeDtypeStruct((B, S, D), x.dtype),
        grid=grid,
        in_specs=[
            pl.BlockSpec((B, TS, D), lambda s: (0, s, 0)),  # streaming x tile
            pl.BlockSpec((TS, D), lambda s: (s, 0)),         # matching pe rows (fetched once)
        ],
        out_specs=pl.BlockSpec((B, TS, D), lambda s: (0, s, 0)),
        input_output_aliases=({0: 0} if in_place else {}),
        compiler_params=pltpu.CompilerParams(
            dimension_semantics=("parallel",),
            vmem_limit_bytes=32 << 20,
        ),
        cost_estimate=cost,
    )(x, pe_weight)


def _run_2d(x, pe_weight, *, target_x_tile_bytes, vmem_budget_bytes, in_place):
    """General case: lane-dense (B, S*D) flattening, cdiv tiling over the flat axis."""
    B, S, D = x.shape
    L = S * D
    itemsize = jnp.dtype(x.dtype).itemsize
    pe_itemsize = jnp.dtype(pe_weight.dtype).itemsize
    x_pack = _sublane_pack(x.dtype)
    pe_pack = _sublane_pack(pe_weight.dtype)

    # Layout plumbing only (no dtype cast here; cast happens in-kernel).
    x2 = x.reshape(B, L)
    pe2 = pe_weight[:S].reshape(1, L)

    # Padding-aware VMEM bytes per flattened column: x + out pad B -> x_pack rows,
    # pe pads its single row to pe_pack rows.  2x for double buffering.
    B_pad = _round_up(B, x_pack)
    bytes_per_col = 2 * B_pad * itemsize + pe_pack * pe_itemsize
    max_cols_budget = max(128, vmem_budget_bytes // (2 * bytes_per_col))
    target_cols = max(128, target_x_tile_bytes // max(1, B * itemsize))

    TL = min(max_cols_budget, target_cols, L)
    if TL >= L:
        TL = L  # single full-width block (block dim == full dim is always legal)
    else:
        TL = max(128, _round_down(TL, 128))
        n = _cdiv(L, TL)
        if 1 < n < 4:
            # v7x megacore: prefer >=4 parallel steps when tiles stay big enough.
            tl4 = _round_up(_cdiv(L, 4), 128)
            if tl4 >= 128 and B * tl4 * itemsize >= (256 << 10):
                TL = min(TL, tl4)

    grid = (_cdiv(L, TL),)  # Pallas masks the partial edge block if TL doesn't divide L
    cost = pl.CostEstimate(
        flops=B * L,
        transcendentals=0,
        bytes_accessed=2 * B * L * itemsize + L * pe_itemsize,
    )

    out2 = pl.pallas_call(
        _add_pe_2d_kernel,
        out_shape=jax.ShapeDtypeStruct((B, L), x.dtype),
        grid=grid,
        in_specs=[
            pl.BlockSpec((B, TL), lambda l: (0, l)),   # streaming x tile
            pl.BlockSpec((1, TL), lambda l: (0, l)),   # matching pe tile (fetched once)
        ],
        out_specs=pl.BlockSpec((B, TL), lambda l: (0, l)),
        input_output_aliases=({0: 0} if in_place else {}),
        compiler_params=pltpu.CompilerParams(
            dimension_semantics=("parallel",),
            vmem_limit_bytes=32 << 20,
        ),
        cost_estimate=cost,
    )(x2, pe2)
    return out2.reshape(B, S, D)


def positional_embedding(x, pe_weight, *,
                         target_x_tile_bytes=4 << 20,
                         vmem_budget_bytes=24 << 20,
                         in_place=False):
    """x: (B, S, D); pe_weight: (max_seq_len, D). Returns x + pe_weight[:S].

    in_place=True aliases the output onto x's HBM buffer (only a win when x is
    donated at the jit boundary; otherwise XLA inserts a defensive copy).
    """
    B, S, D = x.shape
    if D % 128 == 0:
        return _run_3d(x, pe_weight,
                       target_x_tile_bytes=target_x_tile_bytes,
                       vmem_budget_bytes=vmem_budget_bytes,
                       in_place=in_place)
    return _run_2d(x, pe_weight,
                   target_x_tile_bytes=target_x_tile_bytes,
                   vmem_budget_bytes=vmem_budget_bytes,
                   in_place=in_place)


# ---------------------------------- demo --------------------------------------

if __name__ == "__main__":
    MAX_SEQ_LEN = 512
    key = jax.random.PRNGKey(0)
    k1, k2, k3, k4 = jax.random.split(key, 4)

    # Case 1: small D (module-typical small shapes) -> lane-dense 2-D path.
    B, S, D = 2, 8, 32
    x = jax.random.normal(k1, (B, S, D), dtype=jnp.float32)
    pe_weight = jax.random.normal(k2, (MAX_SEQ_LEN, D), dtype=jnp.float32)  # nn.Embedding ~ N(0,1)
    out = jax.block_until_ready(positional_embedding(x, pe_weight))
    ref = x + pe_weight[:S][None, :, :]
    assert out.shape == (B, S, D)
    assert jnp.allclose(out, ref, atol=1e-6), "mismatch vs reference (2-D path)"

    # Case 2: D % 128 == 0 -> 3-D full-sublane path (pe passed in native form).
    B2, S2, D2 = 2, 16, 128
    x2 = jax.random.normal(k3, (B2, S2, D2), dtype=jnp.float32)
    pe_weight2 = jax.random.normal(k4, (MAX_SEQ_LEN, D2), dtype=jnp.float32)
    out2 = jax.block_until_ready(positional_embedding(x2, pe_weight2))
    ref2 = x2 + pe_weight2[:S2][None, :, :]
    assert out2.shape == (B2, S2, D2)
    assert jnp.allclose(out2, ref2, atol=1e-6), "mismatch vs reference (3-D path)"

    print("KERNEL_OK")
</pallas_src>

<mosaic_0001>
module attributes {stable_mosaic.version = 11 : i64} {
  func.func @_add_pe_2d_kernel(%arg0: i32, %arg1: memref<2x256xf32, #tpu.memory_space<vmem>>, %arg2: memref<1x256xf32, #tpu.memory_space<vmem>>, %arg3: memref<2x256xf32, #tpu.memory_space<vmem>>) attributes {dimension_semantics = [#tpu.dimension_semantics<parallel>], iteration_bounds = array<i64: 1>, scalar_prefetch = 0 : i64, scratch_operands = 0 : i64, tpu.core_type = #tpu.core_type<tc>, window_params = [{transform_indices = @transform_0, window_bounds = array<i64: 2, 256>}, {transform_indices = @transform_1, window_bounds = array<i64: 1, 256>}, {transform_indices = @transform_2, window_bounds = array<i64: 2, 256>}]} {
    %c0 = arith.constant 0 : index
    %c0_0 = arith.constant 0 : index
    %0 = vector.load %arg1[%c0, %c0_0] : memref<2x256xf32, #tpu.memory_space<vmem>>, vector<2x256xf32>
    %c0_1 = arith.constant 0 : index
    %c0_2 = arith.constant 0 : index
    %1 = vector.load %arg2[%c0_1, %c0_2] : memref<1x256xf32, #tpu.memory_space<vmem>>, vector<1x256xf32>
    %2 = vector.broadcast %1 : vector<1x256xf32> to vector<2x256xf32>
    %3 = arith.addf %0, %2 : vector<2x256xf32>
    %c0_3 = arith.constant 0 : index
    %c0_4 = arith.constant 0 : index
    %4 = vector.load %arg3[%c0_3, %c0_4] : memref<2x256xf32, #tpu.memory_space<vmem>>, vector<2x256xf32>
    tpu.vector_store %arg3[%c0_3, %c0_4], %3 {strides = array<i32>} : memref<2x256xf32, #tpu.memory_space<vmem>>, vector<2x256xf32>,
    return
  }
  func.func @transform_0(%arg0: i32) -> (i32, i32) {
    %c0_i32 = arith.constant 0 : i32
    %c0_i32_0 = arith.constant 0 : i32
    return %c0_i32, %arg0 : i32, i32
  }
  func.func @transform_1(%arg0: i32) -> (i32, i32) {
    %c0_i32 = arith.constant 0 : i32
    %c0_i32_0 = arith.constant 0 : i32
    return %c0_i32, %arg0 : i32, i32
  }
  func.func @transform_2(%arg0: i32) -> (i32, i32) {
    %c0_i32 = arith.constant 0 : i32
    %c0_i32_0 = arith.constant 0 : i32
    return %c0_i32, %arg0 : i32, i32
  }
}

</mosaic_0001>

<llo_original>
// kernel: tpu_custom_call.1
$region0: #{tpu_custom_call.1}
  #allocation0 [shape = 'u32[]', space=smem, size = 0x4, offset = 0x4, fixed_abs, tag = 'smem constant byte address 0x4 - core index']
  #allocation1 [shape = 'u32[72,128]{1,0:T(1,128)}', space=vmem, size = 0x9000, scoped, tag = 'internal scratch']
  %s0 = inlined_call_operand.hbm [shape: f32[2,256], index: 0, kind: input, shape index: {}]
  %s1 = inlined_call_operand.hbm [shape: f32[1,256], index: 1, kind: input, shape index: {}]
  %s2 = inlined_call_operand.hbm [shape: f32[2,256], index: 2, kind: output, shape index: {}]
  %s3 = sld [smem:[#allocation0]]
  $region26: #{tpu_custom_call.1} parent=0
    _
  %s5 = ssub.s32 1, %s3
  %s6 = scalar_select 0, %s5, %s3
  $region1: #{tpu_custom_call.1} parent=0
    #allocation2 [shape = 'u8[2048]{0}', space=vmem, size = 0x800, scoped, tag = 'input window, operand 0, single buffered']
    #allocation3 [shape = 's32[1]{0}', space=sflag, size = 0x4, scoped, tag = 'scoped memory for tpu_custom_call.1']
    #allocation4 [shape = 's32[1]{0}', space=sflag, size = 0x4, scoped, tag = 'scoped memory for tpu_custom_call.1']
    #allocation5 [shape = 'u8[1024]{0}', space=vmem, size = 0x400, scoped, tag = 'input window, operand 1, single buffered']
    #allocation6 [shape = 's32[1]{0}', space=sflag, size = 0x4, scoped, tag = 'scoped memory for tpu_custom_call.1']
    #allocation7 [shape = 'u8[2048]{0}', space=vmem, size = 0x800, scoped, tag = 'output window, operand 0, single buffered']
    %7 = vsyncpa [#allocation3], 0
    %8 = vsyncpa [#allocation6], 0
    %9 = vsyncpa [#allocation4], 0
    // Predicated region
    $region2: #{tpu_custom_call.1} parent=1 // pred_check
      _
    $region3: #{tpu_custom_call.1} parent=1 // pred_check_branch
      %11 = sbr.rel (0) target = $region5
    $region4: #{tpu_custom_call.1} parent=1 // pred_region
      %13 = vsyncadd [#allocation3], 0
      %s15 = sshll.u32 %s0, 4
      %s16 = int_to_ptr.hbm [resolvable:$true] %s15
      %s17 = sshll.u32 [#allocation2], 4
      %s18 = int_to_ptr.vmem [resolvable:$true] %s17
      %20 = dma.hbm_to_vmem [thread:$0]  %s16, 64, %s18, [#allocation3]
    $region5: #{tpu_custom_call.1} parent=1 // pred_fallthru
      _
    // Predicated region
    $region6: #{tpu_custom_call.1} parent=1 // pred_check
      _
    $region7: #{tpu_custom_call.1} parent=1 // pred_check_branch
      %22 = sbr.rel (0) target = $region9
    $region8: #{tpu_custom_call.1} parent=1 // pred_region
      %24 = vsyncadd [#allocation6], 0
      %s26 = sshll.u32 %s1, 4
      %s27 = int_to_ptr.hbm [resolvable:$true] %s26
      %s28 = sshll.u32 [#allocation5], 4
      %s29 = int_to_ptr.vmem [resolvable:$true] %s28
      %31 = dma.hbm_to_vmem [thread:$0]  %s27, 32, %s29, [#allocation6]
    $region9: #{tpu_custom_call.1} parent=1 // pred_fallthru
      _
    // Predicated region
    $region10: #{tpu_custom_call.1} parent=1 // pred_check
      _
    $region11: #{tpu_custom_call.1} parent=1 // pred_check_branch
      %33 = sbr.rel (0) target = $region13
    $region12: #{tpu_custom_call.1} parent=1 // pred_region
      %35 = dma.done [#allocation3], 64
    $region13: #{tpu_custom_call.1} parent=1 // pred_fallthru
      _
    // Predicated region
    $region14: #{tpu_custom_call.1} parent=1 // pred_check
      _
    $region15: #{tpu_custom_call.1} parent=1 // pred_check_branch
      %37 = sbr.rel (0) target = $region17
    $region16: #{tpu_custom_call.1} parent=1 // pred_region
      %39 = dma.done [#allocation6], 32
    $region17: #{tpu_custom_call.1} parent=1 // pred_fallthru
      _
    %v40 = vld [vmem:[#allocation2] sm:$0xf]
    %v41 = vld [vmem:[#allocation5] sm:$0x3]
    %v43 = vperm.slane %v41, 0
    %v44 = vperm.slane %v41, 1
    %v45 = vrot.slane %v44, 6
    %vm46 = vcmask 1041408
    %v47 = vsel %vm46, %v43, %v45
    %v49 = vadd.f32 %v40, %v47
    %50 = vst [vmem:[#allocation7] sm:$0xf] %v49
    // Predicated region
    $region18: #{tpu_custom_call.1} parent=1 // pred_check
      _
    $region19: #{tpu_custom_call.1} parent=1 // pred_check_branch
      %52 = sbr.rel (0) target = $region21
    $region20: #{tpu_custom_call.1} parent=1 // pred_region
      %54 = vsyncadd [#allocation4], 0
      %s56 = sshll.u32 [#allocation7], 4
      %s57 = int_to_ptr.vmem [resolvable:$true] %s56
      %s58 = sshll.u32 %s2, 4
      %s59 = int_to_ptr.hbm [resolvable:$true] %s58
      %61 = dma.vmem_to_hbm [thread:$0]  %s57, 64, %s59, [#allocation4]
    $region21: #{tpu_custom_call.1} parent=1 // pred_fallthru
      _
    // Predicated region
    $region22: #{tpu_custom_call.1} parent=1 // pred_check
      _
    $region23: #{tpu_custom_call.1} parent=1 // pred_check_branch
      %63 = sbr.rel (0) target = $region25
    $region24: #{tpu_custom_call.1} parent=1 // pred_region
      %65 = dma.done [#allocation4], 64
    $region25: #{tpu_custom_call.1} parent=1 // pred_fallthru
      _
    %66 = vsyncpa [#allocation3], 1
    %67 = vsyncpa [#allocation6], 1
    %68 = vsyncpa [#allocation4], 1

</llo_original>
